<compile_context>
chip_gen: v7x
topology: tpu7x:2x2x1
jax: 0.10.0
libtpu: 0.0.40
codegen_flags: <defaults>
</compile_context>

<pallas_src>
import jax
import jax.numpy as jnp
from jax import lax
from jax.experimental import pallas as pl
from jax.experimental.pallas import tpu as pltpu


def _round_up(x, m):
    return ((x + m - 1) // m) * m


def _prod(shape):
    p = 1
    for s in shape:
        p *= int(s)
    return p


def _choose_row_tile(m, max_tile=256):
    """Multiple-of-8 row tile; prefers >=2 tiles (v7x megacore) and low padding."""
    if m <= max_tile:
        if m >= 16:
            # split so the parallel M axis has 2 blocks -> both TensorCores busy
            return _round_up(pl.cdiv(m, 2), 8)
        return _round_up(m, 8)
    best_t = max_tile
    best_pad = _round_up(m, max_tile) - m
    for t in (192, 128, 96, 64, 32, 16, 8):
        pad = _round_up(m, t) - m
        if pad < best_pad:
            best_t, best_pad = t, pad
    return best_t


def _choose_hidden_tile(hidden, max_tile=512):
    """Hidden (reduction) tile: full dim when small, else a multiple of 128 that
    divides hidden exactly when possible (no weight padding)."""
    if hidden <= max_tile:
        return hidden
    for t in (512, 384, 256, 128):
        if hidden % t == 0:
            return t
    best_t = 128
    best_pad = _round_up(hidden, 128) - hidden
    for t in (512, 384, 256):
        pad = _round_up(hidden, t) - hidden
        if pad < best_pad:
            best_t, best_pad = t, pad
    return best_t


def _vmem_estimate(tm, th, d_in, itemsize, acc_separate):
    """Double-buffered tile footprint + accumulator, in bytes."""
    x_t = tm * d_in * itemsize
    w1_t = th * d_in * itemsize
    b1_t = th * itemsize
    w2_t = d_in * th * itemsize
    b2_t = d_in * itemsize
    o_t = tm * d_in * itemsize
    acc = tm * d_in * 4 if acc_separate else 0
    return 2 * (x_t + w1_t + b1_t + w2_t + b2_t + o_t) + acc


def _ffn_kernel(x_ref, w1_ref, b1_ref, w2_ref, b2_ref, o_ref, *scratch):
    """One (tm, input_dim) output tile; hidden dim is the reduction grid axis."""
    # f32 outputs accumulate directly in the resident output block; low-precision
    # outputs use the f32 scratch accumulator.
    acc_ref = scratch[0] if scratch else o_ref
    h = pl.program_id(1)

    @pl.when(h == 0)
    def _():
        acc_ref[...] = jnp.zeros_like(acc_ref)

    # hid = relu(x @ W1^T + b1) for this hidden-dim block (torch weight layout,
    # contraction on the last dim of both operands -> MXU "NT" matmul).
    hid = lax.dot_general(
        x_ref[...], w1_ref[...],
        dimension_numbers=(((1,), (1,)), ((), ())),
        preferred_element_type=jnp.float32,
    )
    hid = jnp.maximum(hid + b1_ref[...].astype(jnp.float32), 0.0)
    # Dropout(p=0.0) is the identity.

    # Accumulate this block's contribution: hid @ W2[:, block]^T.
    acc_ref[...] += lax.dot_general(
        hid.astype(w2_ref.dtype), w2_ref[...],
        dimension_numbers=(((1,), (1,)), ((), ())),
        preferred_element_type=jnp.float32,
    )

    @pl.when(h == pl.num_programs(1) - 1)
    def _():
        out = acc_ref[...].astype(jnp.float32) + b2_ref[...].astype(jnp.float32)
        o_ref[...] = out.astype(o_ref.dtype)


def feed_forward_pallas(x, w1, b1, w2, b2, *, max_tm=256, max_th=512):
    """FeedForward forward pass.

    x:  (..., input_dim)
    w1: (hidden_dim, input_dim), b1: (hidden_dim,)   -- torch Linear layout
    w2: (input_dim, hidden_dim), b2: (input_dim,)
    """
    orig_shape = x.shape
    d_in = int(orig_shape[-1])
    m = _prod(orig_shape[:-1])
    x2 = x.reshape(m, d_in)

    hidden = int(w1.shape[0])
    assert w1.shape == (hidden, d_in), (w1.shape, hidden, d_in)
    assert w2.shape == (d_in, hidden), (w2.shape, d_in, hidden)

    itemsize = jnp.dtype(x.dtype).itemsize
    acc_separate = jnp.dtype(x.dtype) != jnp.dtype(jnp.float32)

    tm = _choose_row_tile(m, max_tm)
    th = _choose_hidden_tile(hidden, max_th)

    # Shrink tiles until the double-buffered footprint fits a v7x-safe budget.
    vmem_budget = 36 * 1024 * 1024
    while _vmem_estimate(tm, th, d_in, itemsize, acc_separate) > vmem_budget:
        if th >= 256 and th % 256 == 0 and th >= tm:
            th //= 2
        elif tm > 8:
            tm = _round_up(max(8, tm // 2), 8)
        elif th >= 256 and th % 256 == 0:
            th //= 2
        else:
            break

    mp = _round_up(m, tm)
    hp = _round_up(hidden, th)

    # Conditional padding: only copy when a dim does not already divide its tile.
    x_p = x2 if mp == m else jnp.zeros((mp, d_in), x2.dtype).at[:m, :].set(x2)
    if hp == hidden:
        w1_p = w1
        b1_p = b1.reshape(1, hidden)
        w2_p = w2
    else:
        w1_p = jnp.zeros((hp, d_in), w1.dtype).at[:hidden, :].set(w1)
        b1_p = jnp.zeros((1, hp), b1.dtype).at[0, :hidden].set(b1)
        w2_p = jnp.zeros((d_in, hp), w2.dtype).at[:, :hidden].set(w2)
    b2_p = b2.reshape(1, d_in)

    grid = (mp // tm, hp // th)

    est = _vmem_estimate(tm, th, d_in, itemsize, acc_separate)
    vmem_limit = int(min(max(2 * est, 24 * 1024 * 1024), 40 * 1024 * 1024))

    scratch_shapes = (
        [pltpu.VMEM((tm, d_in), jnp.float32)] if acc_separate else []
    )

    out = pl.pallas_call(
        _ffn_kernel,
        out_shape=jax.ShapeDtypeStruct((mp, d_in), x.dtype),
        grid_spec=pltpu.PrefetchScalarGridSpec(
            num_scalar_prefetch=0,
            grid=grid,
            in_specs=[
                pl.BlockSpec((tm, d_in), lambda i, h: (i, 0)),   # x rows
                pl.BlockSpec((th, d_in), lambda i, h: (h, 0)),   # W1 block (torch layout)
                pl.BlockSpec((1, th), lambda i, h: (0, h)),      # b1 block
                pl.BlockSpec((d_in, th), lambda i, h: (0, h)),   # W2 block (torch layout)
                pl.BlockSpec((1, d_in), lambda i, h: (0, 0)),    # b2
            ],
            out_specs=pl.BlockSpec((tm, d_in), lambda i, h: (i, 0)),
            scratch_shapes=scratch_shapes,
        ),
        compiler_params=pltpu.CompilerParams(
            dimension_semantics=("parallel", "arbitrary"),
            vmem_limit_bytes=vmem_limit,
        ),
        cost_estimate=pl.CostEstimate(
            flops=4 * mp * d_in * hp,  # two matmuls, 2 flops/MAC each
            bytes_accessed=itemsize
            * (2 * mp * d_in + 2 * hp * d_in + hp + d_in),
            transcendentals=0,
        ),
    )(x_p, w1_p, b1_p, w2_p, b2_p)

    if mp != m:
        out = out[:m, :]
    return out.reshape(orig_shape)


if __name__ == "__main__":
    # Small shapes consistent with the module: x is (batch, seq, input_dim).
    batch, seq, input_dim, hidden_dim = 2, 8, 32, 64

    key = jax.random.PRNGKey(0)
    kx, kw1, kb1, kw2, kb2 = jax.random.split(key, 5)

    x = jax.random.normal(kx, (batch, seq, input_dim), dtype=jnp.float32)
    # torch.nn.Linear stores weight as (out_features, in_features).
    w1 = jax.random.normal(kw1, (hidden_dim, input_dim), dtype=jnp.float32) * 0.1
    b1 = jax.random.normal(kb1, (hidden_dim,), dtype=jnp.float32) * 0.1
    w2 = jax.random.normal(kw2, (input_dim, hidden_dim), dtype=jnp.float32) * 0.1
    b2 = jax.random.normal(kb2, (input_dim,), dtype=jnp.float32) * 0.1

    out = jax.block_until_ready(feed_forward_pallas(x, w1, b1, w2, b2))

    # Plain-JAX reference of the PyTorch forward:
    #   relu(x @ W1^T + b1) @ W2^T + b2     (dropout p=0.0 -> identity)
    x2 = x.reshape(-1, input_dim)
    ref = (jnp.maximum(x2 @ w1.T + b1, 0.0) @ w2.T + b2).reshape(x.shape)

    assert out.shape == x.shape
    assert jnp.allclose(out, ref, atol=1e-4, rtol=1e-4), "mismatch vs reference"

    print("KERNEL_OK")
</pallas_src>

<mosaic_0001>
module attributes {stable_mosaic.version = 11 : i64} {
  func.func @_ffn_kernel(%arg0: i32, %arg1: i32, %arg2: memref<8x32xf32, #tpu.memory_space<vmem>>, %arg3: memref<64x32xf32, #tpu.memory_space<vmem>>, %arg4: memref<1x64xf32, #tpu.memory_space<vmem>>, %arg5: memref<32x64xf32, #tpu.memory_space<vmem>>, %arg6: memref<1x32xf32, #tpu.memory_space<vmem>>, %arg7: memref<8x32xf32, #tpu.memory_space<vmem>>) attributes {dimension_semantics = [#tpu.dimension_semantics<parallel>, #tpu.dimension_semantics<arbitrary>], iteration_bounds = array<i64: 2, 1>, scalar_prefetch = 0 : i64, scratch_operands = 0 : i64, tpu.core_type = #tpu.core_type<tc>, window_params = [{transform_indices = @transform_0, window_bounds = array<i64: 8, 32>}, {transform_indices = @transform_1, window_bounds = array<i64: 64, 32>}, {transform_indices = @transform_2, window_bounds = array<i64: 1, 64>}, {transform_indices = @transform_3, window_bounds = array<i64: 32, 64>}, {pipeline_mode = #tpu.pipeline_mode<synchronous>, transform_indices = @transform_4, window_bounds = array<i64: 1, 32>}, {transform_indices = @transform_5, window_bounds = array<i64: 8, 32>}]} {
    %c0_i32 = arith.constant 0 : i32
    %0 = arith.cmpi eq, %arg1, %c0_i32 : i32
    %1 = arith.extui %0 : i1 to i32
    %c0_i32_0 = arith.constant 0 : i32
    %2 = arith.cmpi ne, %1, %c0_i32_0 : i32
    scf.if %2 {
      %cst_16 = arith.constant 0.000000e+00 : f32
      %19 = vector.broadcast %cst_16 : f32 to vector<8x32xf32>
      %c0_17 = arith.constant 0 : index
      %c0_18 = arith.constant 0 : index
      %20 = vector.load %arg7[%c0_17, %c0_18] : memref<8x32xf32, #tpu.memory_space<vmem>>, vector<8x32xf32>
      tpu.vector_store %arg7[%c0_17, %c0_18], %19 {strides = array<i32>} : memref<8x32xf32, #tpu.memory_space<vmem>>, vector<8x32xf32>,
    } else {
    }
    %c0 = arith.constant 0 : index
    %c0_1 = arith.constant 0 : index
    %3 = vector.load %arg2[%c0, %c0_1] : memref<8x32xf32, #tpu.memory_space<vmem>>, vector<8x32xf32>
    %c0_2 = arith.constant 0 : index
    %c0_3 = arith.constant 0 : index
    %4 = vector.load %arg3[%c0_2, %c0_3] : memref<64x32xf32, #tpu.memory_space<vmem>>, vector<64x32xf32>
    %cst = arith.constant dense<0.000000e+00> : vector<8x64xf32>
    %5 = tpu.matmul %3, %4, %cst {dimension_numbers = #tpu.dot_dimension_numbers<[1], [1], [0], [0], [0, 0, 1, 0], [], []>} : vector<8x32xf32>, vector<64x32xf32>, vector<8x64xf32> -> vector<8x64xf32>
    %c0_4 = arith.constant 0 : index
    %c0_5 = arith.constant 0 : index
    %6 = vector.load %arg4[%c0_4, %c0_5] : memref<1x64xf32, #tpu.memory_space<vmem>>, vector<1x64xf32>
    %7 = vector.broadcast %6 : vector<1x64xf32> to vector<8x64xf32>
    %8 = arith.addf %5, %7 : vector<8x64xf32>
    %cst_6 = arith.constant 0.000000e+00 : f32
    %9 = vector.broadcast %cst_6 : f32 to vector<8x64xf32>
    %10 = arith.maximumf %8, %9 : vector<8x64xf32>
    %c0_7 = arith.constant 0 : index
    %c0_8 = arith.constant 0 : index
    %11 = vector.load %arg7[%c0_7, %c0_8] : memref<8x32xf32, #tpu.memory_space<vmem>>, vector<8x32xf32>
    %c0_9 = arith.constant 0 : index
    %c0_10 = arith.constant 0 : index
    %12 = vector.load %arg5[%c0_9, %c0_10] : memref<32x64xf32, #tpu.memory_space<vmem>>, vector<32x64xf32>
    %cst_11 = arith.constant dense<0.000000e+00> : vector<8x32xf32>
    %13 = tpu.matmul %10, %12, %cst_11 {dimension_numbers = #tpu.dot_dimension_numbers<[1], [1], [0], [0], [0, 0, 1, 0], [], []>} : vector<8x64xf32>, vector<32x64xf32>, vector<8x32xf32> -> vector<8x32xf32>
    %14 = arith.addf %11, %13 : vector<8x32xf32>
    %c0_12 = arith.constant 0 : index
    %c0_13 = arith.constant 0 : index
    %15 = vector.load %arg7[%c0_12, %c0_13] : memref<8x32xf32, #tpu.memory_space<vmem>>, vector<8x32xf32>
    tpu.vector_store %arg7[%c0_12, %c0_13], %14 {strides = array<i32>} : memref<8x32xf32, #tpu.memory_space<vmem>>, vector<8x32xf32>,
    %c0_i32_14 = arith.constant 0 : i32
    %16 = arith.cmpi eq, %arg1, %c0_i32_14 : i32
    %17 = arith.extui %16 : i1 to i32
    %c0_i32_15 = arith.constant 0 : i32
    %18 = arith.cmpi ne, %17, %c0_i32_15 : i32
    scf.if %18 {
      %c0_16 = arith.constant 0 : index
      %c0_17 = arith.constant 0 : index
      %19 = vector.load %arg7[%c0_16, %c0_17] : memref<8x32xf32, #tpu.memory_space<vmem>>, vector<8x32xf32>
      %c0_18 = arith.constant 0 : index
      %c0_19 = arith.constant 0 : index
      %20 = vector.load %arg6[%c0_18, %c0_19] : memref<1x32xf32, #tpu.memory_space<vmem>>, vector<1x32xf32>
      %21 = vector.broadcast %20 : vector<1x32xf32> to vector<8x32xf32>
      %22 = arith.addf %19, %21 : vector<8x32xf32>
      %c0_20 = arith.constant 0 : index
      %c0_21 = arith.constant 0 : index
      %23 = vector.load %arg7[%c0_20, %c0_21] : memref<8x32xf32, #tpu.memory_space<vmem>>, vector<8x32xf32>
      tpu.vector_store %arg7[%c0_20, %c0_21], %22 {strides = array<i32>} : memref<8x32xf32, #tpu.memory_space<vmem>>, vector<8x32xf32>,
    } else {
    }
    return
  }
  func.func @transform_0(%arg0: i32, %arg1: i32) -> (i32, i32) {
    %c0_i32 = arith.constant 0 : i32
    %c0_i32_0 = arith.constant 0 : i32
    return %arg0, %c0_i32 : i32, i32
  }
  func.func @transform_1(%arg0: i32, %arg1: i32) -> (i32, i32) {
    %c0_i32 = arith.constant 0 : i32
    %c0_i32_0 = arith.constant 0 : i32
    return %arg1, %c0_i32 : i32, i32
  }
  func.func @transform_2(%arg0: i32, %arg1: i32) -> (i32, i32) {
    %c0_i32 = arith.constant 0 : i32
    %c0_i32_0 = arith.constant 0 : i32
    return %c0_i32, %arg1 : i32, i32
  }
  func.func @transform_3(%arg0: i32, %arg1: i32) -> (i32, i32) {
    %c0_i32 = arith.constant 0 : i32
    %c0_i32_0 = arith.constant 0 : i32
    return %c0_i32, %arg1 : i32, i32
  }
  func.func @transform_4(%arg0: i32, %arg1: i32) -> (i32, i32) {
    %c0_i32 = arith.constant 0 : i32
    %c0_i32_0 = arith.constant 0 : i32
    %c0_i32_1 = arith.constant 0 : i32
    return %c0_i32, %c0_i32_0 : i32, i32
  }
  func.func @transform_5(%arg0: i32, %arg1: i32) -> (i32, i32) {
    %c0_i32 = arith.constant 0 : i32
    %c0_i32_0 = arith.constant 0 : i32
    return %arg0, %c0_i32 : i32, i32
  }
}

</mosaic_0001>

<llo_original>
// kernel: tpu_custom_call.1
$region0: #{tpu_custom_call.1}
  #allocation0 [shape = 'u32[]', space=smem, size = 0x4, offset = 0x4, fixed_abs, tag = 'smem constant byte address 0x4 - core index']
  #allocation1 [shape = 'u32[144,128]{1,0:T(1,128)}', space=vmem, size = 0x12000, scoped, tag = 'internal scratch']
  %s0 = inlined_call_operand.vmem [shape: f32[16,32], index: 0, kind: input, shape index: {}]
  %s1 = inlined_call_operand.vmem [shape: f32[64,32], index: 1, kind: input, shape index: {}]
  %s2 = inlined_call_operand.vmem [shape: f32[1,64], index: 2, kind: input, shape index: {}]
  %s3 = inlined_call_operand.vmem [shape: f32[32,64], index: 3, kind: input, shape index: {}]
  %s4 = inlined_call_operand.vmem [shape: f32[1,32], index: 4, kind: input, shape index: {}]
  %s5 = inlined_call_operand.hbm [shape: f32[16,32], index: 5, kind: output, shape index: {}]
  %s6 = sld [smem:[#allocation0]]
  $region61: #{tpu_custom_call.1} parent=0
    _
  %s8 = ssub.s32 1, %s6
  %s9 = scalar_select 0, %s8, %s6
  $region1: #{tpu_custom_call.1} parent=0
    #allocation2 [shape = 'u8[8192]{0}', space=vmem, size = 0x2000, scoped, tag = 'output window, operand 0']
    #allocation3 [shape = 's32[2]{0}', space=sflag, size = 0x8, scoped, tag = 'scoped memory for tpu_custom_call.1']
    %10 = vsyncpa [#allocation3], 0
    %s11 = scalar_lea.sflag [#allocation3], 1
    %12 = vsyncpa %s11, 0
    loop: start=0, step=1, limit=4
    $region2: #{tpu_custom_call.1} parent=1 // loop_pre_header
      _
    $region3: #{tpu_custom_call.1} parent=1 // loop_header
      %s14 = sphi 0, %s18
      %p15 = scmp.ge.s32.totalorder %s14, 4
      %s21 = sphi 0, %s33
      %s22 = sphi 0, %s29
      %s23 = sphi 0, %s21
      %s24 = sphi 0, %s22
      %s25 = sphi 0, %s23
      %s26 = sphi 0, %s24
      %s36 = sphi 0, %s38
      %s39 = sphi 0, %s36
      %s40 = sphi 0, %s39
      %s56 = sphi 0, %s40
      %s62 = sphi 0, %s64
      %s65 = sphi 0, %s62
      %s66 = sphi 0, %s65
      %s82 = sphi 0, %s66
      %s88 = sphi 0, %s90
      %s91 = sphi 0, %s88
      %s92 = sphi 0, %s91
      %s108 = sphi 0, %s92
      %s114 = sphi 0, %s116
      %s117 = sphi 0, %s114
      %s118 = sphi 0, %s117
      %s134 = sphi 0, %s118
      %s138 = sphi 0, %s138
      %s140 = sphi 0, %s138
      %s141 = sphi 0, %s140
      %s155 = sphi 0, %s141
      %s161 = sphi 0, %s163
      %s164 = sphi 0, %s161
      %s165 = sphi 0, %s164
      %s181 = sphi 0, %s165
    $region4: #{tpu_custom_call.1} parent=1 // loop_header_branch
      %17 = sbr.rel (%p15) target = $region8
    $region5: #{tpu_custom_call.1} parent=1 // loop_body
      %s19 = ssub.s32 %s14, 1
      %s20 = ssub.s32 %s14, 2
      %s27 = sadd.s32 1, %s22
      %p28 = scmp.ge.s32.totalorder %s27, 1
      %s29 = scalar_select %p28, 0, %s27
      %s30 = sadd.s32 1, %s21
      %s31 = scalar_select %p28, %s30, %s21
      %p32 = scmp.ge.s32.totalorder %s31, 2
      %s33 = scalar_select %p32, 0, %s31
      %s34 = ssub.s32 %s21, %s33
      %p35 = scmp.eq.s32.totalorder %s34, 0
      %s37 = sadd.s32 %s36, 1
      %s38 = scalar_select %p35, %s36, %s37
      %p41 = pneg %p35
      %p42 = scmp.eq.s32.totalorder %s14, 1
      %p43 = por %p41, %p42
      %p44 = scmp.ne.s32.totalorder %s36, %s39
      %p45 = scmp.eq.s32.totalorder %s14, 0
      %p46 = por %p44, %p45
      %p47 = scmp.ne.s32.totalorder %s36, %s39
      %p48 = scmp.eq.s32.totalorder %s19, 1
      %p49 = por %p47, %p48
      %p50 = scmp.ne.s32.totalorder %s39, %s40
      %p51 = scmp.eq.s32.totalorder %s19, 0
      %p52 = por %p50, %p51
      %p53 = scmp.ne.s32.totalorder %s39, %s40
      %p54 = scmp.eq.s32.totalorder %s20, 1
      %p55 = por %p53, %p54
      %p57 = scmp.ne.s32.totalorder %s40, %s56
      %p58 = scmp.eq.s32.totalorder %s20, 0
      %p59 = por %p57, %p58
      %s60 = ssub.s32 %s22, %s29
      %p61 = scmp.eq.s32.totalorder %s60, 0
      %s63 = sadd.s32 %s62, 1
      %s64 = scalar_select %p61, %s62, %s63
      %p67 = pneg %p61
      %p68 = scmp.eq.s32.totalorder %s14, 1
      %p69 = por %p67, %p68
      %p70 = scmp.ne.s32.totalorder %s62, %s65
      %p71 = scmp.eq.s32.totalorder %s14, 0
      %p72 = por %p70, %p71
      %p73 = scmp.ne.s32.totalorder %s62, %s65
      %p74 = scmp.eq.s32.totalorder %s19, 1
      %p75 = por %p73, %p74
      %p76 = scmp.ne.s32.totalorder %s65, %s66
      %p77 = scmp.eq.s32.totalorder %s19, 0
      %p78 = por %p76, %p77
      %p79 = scmp.ne.s32.totalorder %s65, %s66
      %p80 = scmp.eq.s32.totalorder %s20, 1
      %p81 = por %p79, %p80
      %p83 = scmp.ne.s32.totalorder %s66, %s82
      %p84 = scmp.eq.s32.totalorder %s20, 0
      %p85 = por %p83, %p84
      %s86 = ssub.s32 %s22, %s29
      %p87 = scmp.eq.s32.totalorder %s86, 0
      %s89 = sadd.s32 %s88, 1
      %s90 = scalar_select %p87, %s88, %s89
      %p93 = pneg %p87
      %p94 = scmp.eq.s32.totalorder %s14, 1
      %p95 = por %p93, %p94
      %p96 = scmp.ne.s32.totalorder %s88, %s91
      %p97 = scmp.eq.s32.totalorder %s14, 0
      %p98 = por %p96, %p97
      %p99 = scmp.ne.s32.totalorder %s88, %s91
      %p100 = scmp.eq.s32.totalorder %s19, 1
      %p101 = por %p99, %p100
      %p102 = scmp.ne.s32.totalorder %s91, %s92
      %p103 = scmp.eq.s32.totalorder %s19, 0
      %p104 = por %p102, %p103
      %p105 = scmp.ne.s32.totalorder %s91, %s92
      %p106 = scmp.eq.s32.totalorder %s20, 1
      %p107 = por %p105, %p106
      %p109 = scmp.ne.s32.totalorder %s92, %s108
      %p110 = scmp.eq.s32.totalorder %s20, 0
      %p111 = por %p109, %p110
      %s112 = ssub.s32 %s22, %s29
      %p113 = scmp.eq.s32.totalorder %s112, 0
      %s115 = sadd.s32 %s114, 1
      %s116 = scalar_select %p113, %s114, %s115
      %p119 = pneg %p113
      %p120 = scmp.eq.s32.totalorder %s14, 1
      %p121 = por %p119, %p120
      %p122 = scmp.ne.s32.totalorder %s114, %s117
      %p123 = scmp.eq.s32.totalorder %s14, 0
      %p124 = por %p122, %p123
      %p125 = scmp.ne.s32.totalorder %s114, %s117
      %p126 = scmp.eq.s32.totalorder %s19, 1
      %p127 = por %p125, %p126
      %p128 = scmp.ne.s32.totalorder %s117, %s118
      %p129 = scmp.eq.s32.totalorder %s19, 0
      %p130 = por %p128, %p129
      %p131 = scmp.ne.s32.totalorder %s117, %s118
      %p132 = scmp.eq.s32.totalorder %s20, 1
      %p133 = por %p131, %p132
      %p135 = scmp.ne.s32.totalorder %s118, %s134
      %p136 = scmp.eq.s32.totalorder %s20, 0
      %p137 = por %p135, %p136
      %s139 = sadd.s32 %s138, 1
      %p142 = scmp.eq.s32.totalorder %s14, 1
      %p143 = scmp.ne.s32.totalorder %s138, %s140
      %p144 = scmp.eq.s32.totalorder %s14, 0
      %p145 = por %p143, %p144
      %p146 = scmp.ne.s32.totalorder %s138, %s140
      %p147 = scmp.eq.s32.totalorder %s19, 1
      %p148 = por %p146, %p147
      %p149 = scmp.ne.s32.totalorder %s140, %s141
      %p150 = scmp.eq.s32.totalorder %s19, 0
      %p151 = por %p149, %p150
      %p152 = scmp.ne.s32.totalorder %s140, %s141
      %p153 = scmp.eq.s32.totalorder %s20, 1
      %p154 = por %p152, %p153
      %p156 = scmp.ne.s32.totalorder %s141, %s155
      %p157 = scmp.eq.s32.totalorder %s20, 0
      %p158 = por %p156, %p157
      %s159 = ssub.s32 %s21, %s33
      %p160 = scmp.eq.s32.totalorder %s159, 0
      %s162 = sadd.s32 %s161, 1
      %s163 = scalar_select %p160, %s161, %s162
      %p166 = pneg %p160
      %p167 = scmp.eq.s32.totalorder %s14, 1
      %p168 = por %p166, %p167
      %p169 = scmp.ne.s32.totalorder %s161, %s164
      %p170 = scmp.eq.s32.totalorder %s14, 0
      %p171 = por %p169, %p170
      %p172 = scmp.ne.s32.totalorder %s161, %s164
      %p173 = scmp.eq.s32.totalorder %s19, 1
      %p174 = por %p172, %p173
      %p175 = scmp.ne.s32.totalorder %s164, %s165
      %p176 = scmp.eq.s32.totalorder %s19, 0
      %p177 = por %p175, %p176
      %p178 = scmp.ne.s32.totalorder %s164, %s165
      %p179 = scmp.eq.s32.totalorder %s20, 1
      %p180 = por %p178, %p179
      %p182 = scmp.ne.s32.totalorder %s165, %s181
      %p183 = scmp.eq.s32.totalorder %s20, 0
      %p184 = por %p182, %p183
      %p185 = scmp.le.s32.totalorder 1, %s14
      %p186 = scmp.lt.s32.totalorder %s14, 3
      %p187 = pnand %p185, %p186
      %p188 = pneg %p187
      // Predicated region
      $region9: #{tpu_custom_call.1} parent=5 // pred_check
        _
      $region10: #{tpu_custom_call.1} parent=5 // pred_check_branch
        %190 = sbr.rel (%p187) target = $region12
      $region11: #{tpu_custom_call.1} parent=5 // pred_region
        %s191 = ssub.s32 %s14, 1
        // Predicated region
        $region13: #{tpu_custom_call.1} parent=11 // pred_check
          %p192 = pneg %p78
        $region14: #{tpu_custom_call.1} parent=11 // pred_check_branch
          %194 = sbr.rel (%p192) target = $region16
        $region15: #{tpu_custom_call.1} parent=11 // pred_region
          %s195 = smul.u32 8, %s24
          %p196 = scmp.lt.s32.totalorder %s195, 7
          %s197 = scalar_select %p196, %s195, 7
          %s198 = smul.addr %s197, 8
          %s199 = scalar_lea.vmem %s1, %s198
          %s200 = smul.u32 8, %s24
        $region16: #{tpu_custom_call.1} parent=11 // pred_fallthru
          _
        // Predicated region
        $region17: #{tpu_custom_call.1} parent=11 // pred_check
          %p201 = pneg %p104
        $region18: #{tpu_custom_call.1} parent=11 // pred_check_branch
          %203 = sbr.rel (%p201) target = $region20
        $region19: #{tpu_custom_call.1} parent=11 // pred_region
          %p204 = scmp.lt.s32.totalorder %s24, 0
          %s205 = scalar_select %p204, %s24, 0
          %s206 = scalar_lea.vmem %s2, %s205
        $region20: #{tpu_custom_call.1} parent=11 // pred_fallthru
          _
        // Predicated region
        $region21: #{tpu_custom_call.1} parent=11 // pred_check
          %p207 = pneg %p130
        $region22: #{tpu_custom_call.1} parent=11 // pred_check_branch
          %209 = sbr.rel (%p207) target = $region24
        $region23: #{tpu_custom_call.1} parent=11 // pred_region
          %p210 = scmp.lt.s32.totalorder %s24, 0
          %s211 = scalar_select %p210, %s24, 0
          %s212 = smul.addr %s211, 8
          %s213 = scalar_lea.vmem %s3, %s212
        $region24: #{tpu_custom_call.1} parent=11 // pred_fallthru
          _
        // Predicated region
        $region25: #{tpu_custom_call.1} parent=11 // pred_check
          %p214 = pneg %p151
        $region26: #{tpu_custom_call.1} parent=11 // pred_check_branch
          %216 = sbr.rel (%p214) target = $region28
        $region27: #{tpu_custom_call.1} parent=11 // pred_region
          _
        $region28: #{tpu_custom_call.1} parent=11 // pred_fallthru
          _
      $region12: #{tpu_custom_call.1} parent=5 // pred_fallthru
        _
      %p217 = scmp.lt.s32.totalorder %s14, 2
      // Predicated region
      $region29: #{tpu_custom_call.1} parent=5 // pred_check
        %p218 = pneg %p217
      $region30: #{tpu_custom_call.1} parent=5 // pred_check_branch
        %220 = sbr.rel (%p218) target = $region32
      $region31: #{tpu_custom_call.1} parent=5 // pred_region
        // Predicated region
        $region33: #{tpu_custom_call.1} parent=31 // pred_check
          %p221 = pneg %p46
        $region34: #{tpu_custom_call.1} parent=31 // pred_check_branch
          %223 = sbr.rel (%p221) target = $region36
        $region35: #{tpu_custom_call.1} parent=31 // pred_region
          %p224 = scmp.lt.s32.totalorder %s21, 1
          %s225 = scalar_select %p224, %s21, 1
          %s226 = smul.addr %s225, 8
          %s227 = scalar_lea.vmem %s0, %s226
        $region36: #{tpu_custom_call.1} parent=31 // pred_fallthru
          _
      $region32: #{tpu_custom_call.1} parent=5 // pred_fallthru
        _
      %p228 = scmp.le.s32.totalorder 1, %s14
      %p229 = scmp.lt.s32.totalorder %s14, 3
      %p230 = pnand %p228, %p229
      %p231 = pneg %p230
      // Predicated region
      $region37: #{tpu_custom_call.1} parent=5 // pred_check
        _
      $region38: #{tpu_custom_call.1} parent=5 // pred_check_branch
        %233 = sbr.rel (%p230) target = $region40
      $region39: #{tpu_custom_call.1} parent=5 // pred_region
        %s234 = ssub.s32 %s14, 1
        %p235 = scmp.lt.s32.totalorder %s23, 1
        %s236 = scalar_select %p235, %s23, 1
        %s237 = smul.addr %s236, 8
        %s238 = scalar_lea.vmem %s0, %s237
        %p239 = pneg %p52
        %p240 = pneg %p49
        %s241 = smul.u32 8, %s24
        %p242 = scmp.lt.s32.totalorder %s241, 7
        %s243 = scalar_select %p242, %s241, 7
        %s244 = smul.addr %s243, 8
        %s245 = scalar_lea.vmem %s1, %s244
        %p246 = pneg %p78
        %p247 = pneg %p75
        %p248 = scmp.lt.s32.totalorder %s24, 0
        %s249 = scalar_select %p248, %s24, 0
        %s250 = scalar_lea.vmem %s2, %s249
        %p251 = pneg %p104
        %p252 = pneg %p101
        %p253 = scmp.lt.s32.totalorder %s24, 0
        %s254 = scalar_select %p253, %s24, 0
        %s255 = smul.addr %s254, 8
        %s256 = scalar_lea.vmem %s3, %s255
        %p257 = pneg %p130
        %p258 = pneg %p127
        %p259 = pneg %p151
        %p260 = pneg %p148
        %p261 = pneg %p177
        %p262 = pneg %p174
        %s263 = sand.u32 %s164, 1
        %s264 = scalar_lea.sflag [#allocation3], %s263
        %s265 = sand.u32 %s164, 1
        %s266 = smul.addr %s265, 8
        %s267 = scalar_lea.vmem [#allocation2], %s266
        %p268 = scmp.lt.s32.totalorder %s23, 1
        %s269 = scalar_select %p268, %s23, 1
        %s270 = smul.addr %s269, 8
        %s271 = scalar_lea.vmem %s0, %s270
        %s272 = smul.u32 8, %s24
        %p273 = scmp.lt.s32.totalorder %s272, 7
        %s274 = scalar_select %p273, %s272, 7
        %s275 = smul.addr %s274, 8
        %s276 = scalar_lea.vmem %s1, %s275
        %s277 = smul.u32 8, %s24
        %p278 = scmp.lt.s32.totalorder %s24, 0
        %s279 = scalar_select %p278, %s24, 0
        %s280 = scalar_lea.vmem %s2, %s279
        %p281 = scmp.lt.s32.totalorder %s24, 0
        %s282 = scalar_select %p281, %s24, 0
        %s283 = smul.addr %s282, 8
        %s284 = scalar_lea.vmem %s3, %s283
        %p285 = scmp.eq.s32.totalorder %s24, 0
        // Predicated region
        $region41: #{tpu_custom_call.1} parent=39 // pred_check
          %p286 = pneg %p285
        $region42: #{tpu_custom_call.1} parent=39 // pred_check_branch
          %288 = sbr.rel (%p286) target = $region44
        $region43: #{tpu_custom_call.1} parent=39 // pred_region
          %vm289 = vcmask 261120
          %290 = vst.msk [vmem:[%s267] sm:$0xff] %vm289, 0.0
        $region44: #{tpu_custom_call.1} parent=39 // pred_fallthru
          _
        %v291 = vld [vmem:[%s271] sm:$0xff]
        %v292 = vld [vmem:[%s276] sm:$0xff]
        %v293 = vld [vmem:[%s276 + $0x8] sm:$0xff]
        %v294 = vld [vmem:[%s276 + $0x10] sm:$0xff]
        %v295 = vld [vmem:[%s276 + $0x18] sm:$0xff]
        %v296 = vld [vmem:[%s276 + $0x20] sm:$0xff]
        %v297 = vld [vmem:[%s276 + $0x28] sm:$0xff]
        %v298 = vld [vmem:[%s276 + $0x30] sm:$0xff]
        %v299 = vld [vmem:[%s276 + $0x38] sm:$0xff]
        %v300 = vld [vmem:[%s280] sm:$0x1]
        %v302 = vlaneseq
        %v303 = vshrl.u32 %v302, 7
        %v304 = vsub.s32 0, %v303
        %v305 = vrot.slane %v300, %v304
        %vm307 = vcmask 261120
        %v309 = vsel %vm307, %v291, 0
        %v312 = vsel %vm307, %v292, 0
        %v315 = vsel %vm307, %v293, 0
        %v318 = vsel %vm307, %v294, 0
        %v321 = vsel %vm307, %v295, 0
        %v324 = vsel %vm307, %v296, 0
        %v327 = vsel %vm307, %v297, 0
        %v330 = vsel %vm307, %v298, 0
        %v333 = vsel %vm307, %v299, 0
        %335 = vmatprep.subr.mxu0 0.0
        %336 = vmatpush1.xpose.msra.mxu0 %v312
        %337 = vmatprep.subr.mxu0 0.0
        %338 = vmatpush1.xpose.msra.mxu0 %v315
        %339 = vmatprep.subr.mxu0 0.0
        %340 = vmatpush1.xpose.msra.mxu0 %v318
        %341 = vmatprep.subr.mxu0 0.0
        %342 = vmatpush1.xpose.msra.mxu0 %v321
        %343 = vmatprep.subr.mxu0 0.0
        %344 = vmatpush1.xpose.msra.mxu0 %v324
        %345 = vmatprep.subr.mxu0 0.0
        %346 = vmatpush1.xpose.msra.mxu0 %v327
        %347 = vmatprep.subr.mxu0 0.0
        %348 = vmatpush1.xpose.msra.mxu0 %v330
        %349 = vmatprep.subr.mxu0 0.0
        %350 = vmatpush1.xpose.msra.mxu0 %v333
        %351 = vmatprep.subr.mxu0 0.0
        %352 = vmatpush1.xpose.msra.mxu0 0.0
        %353 = vmatprep.subr.mxu0 0.0
        %354 = vmatpush1.xpose.msra.mxu0 0.0
        %355 = vmatprep.subr.mxu0 0.0
        %356 = vmatpush1.xpose.msra.mxu0 0.0
        %357 = vmatprep.subr.mxu0 0.0
        %358 = vmatpush1.xpose.msra.mxu0 0.0
        %359 = vmatprep.subr.mxu0 0.0
        %360 = vmatpush1.xpose.msra.mxu0 0.0
        %361 = vmatprep.subr.mxu0 0.0
        %362 = vmatpush1.xpose.msra.mxu0 0.0
        %363 = vmatprep.subr.mxu0 0.0
        %364 = vmatpush1.xpose.msra.mxu0 0.0
        %365 = vmatprep.subr.mxu0 0.0
        %366 = vmatpush1.xpose.msra.mxu0 0.0
        %367 = vmatprep.subr.mxu0 0.0
        %368 = vmatpush1.xpose.msra.mxu0 0.0
        %369 = vmatprep.subr.mxu0 0.0
        %370 = vmatpush1.xpose.msra.mxu0 0.0
        %371 = vmatprep.subr.mxu0 0.0
        %372 = vmatpush1.xpose.msra.mxu0 0.0
        %373 = vmatprep.subr.mxu0 0.0
        %374 = vmatpush1.xpose.msra.mxu0 0.0
        %375 = vmatprep.subr.mxu0 0.0
        %376 = vmatpush1.xpose.msra.mxu0 0.0
        %377 = vmatprep.subr.mxu0 0.0
        %378 = vmatpush1.xpose.msra.mxu0 0.0
        %379 = vmatprep.subr.mxu0 0.0
        %380 = vmatpush1.xpose.msra.mxu0 0.0
        %381 = vmatprep.subr.mxu0 0.0
        %382 = vmatpush1.xpose.msra.mxu0 0.0
        %383 = vmatprep.subr.mxu0 0.0
        %384 = vmatpush1.xpose.msra.mxu0 0.0
        %385 = vmatprep.subr.mxu0 0.0
        %386 = vmatpush1.xpose.msra.mxu0 0.0
        %387 = vmatprep.subr.mxu0 0.0
        %388 = vmatpush1.xpose.msra.mxu0 0.0
        %389 = vmatprep.subr.mxu0 0.0
        %390 = vmatpush1.xpose.msra.mxu0 0.0
        %391 = vmatprep.subr.mxu0 0.0
        %392 = vmatpush1.xpose.msra.mxu0 0.0
        %393 = vmatprep.subr.mxu0 0.0
        %394 = vmatpush1.xpose.msra.mxu0 0.0
        %395 = vmatprep.subr.mxu0 0.0
        %396 = vmatpush1.xpose.msra.mxu0 0.0
        %397 = vmatprep.subr.mxu0 0.0
        %398 = vmatpush1.xpose.msra.mxu0 0.0
        %399 = vmatprep.mubr.f32.mxu0 0.0
        %400 = vmatmul.mubr.f32.gmra.mrb[0].mxu0 %v309
        %v401 = vpop.f32.mrb[0].mxu0
        %v402 = vadd.f32 %v305, %v401
        %v403 = vpop.f32.mrb[0].mxu0
        %404 = vdwg.mxu0
        %v405 = vmax.f32 %v402, 0.0
        %v406 = vld [vmem:[%s267] sm:$0xff]
        %v407 = vld [vmem:[%s284] sm:$0xff]
        %v408 = vld [vmem:[%s284 + $0x8] sm:$0xff]
        %v409 = vld [vmem:[%s284 + $0x10] sm:$0xff]
        %v410 = vld [vmem:[%s284 + $0x18] sm:$0xff]
        %vm411 = vcmask 523264
        %v413 = vsel %vm411, %v405, 0
        %v416 = vsel %vm411, %v407, 0
        %v419 = vsel %vm411, %v408, 0
        %v422 = vsel %vm411, %v409, 0
        %v425 = vsel %vm411, %v410, 0
        %427 = vmatprep.subr.mxu0 0.0
        %428 = vmatpush1.xpose.msra.mxu0 %v416
        %429 = vmatprep.subr.mxu0 0.0
        %430 = vmatpush1.xpose.msra.mxu0 %v419
        %431 = vmatprep.subr.mxu0 0.0
        %432 = vmatpush1.xpose.msra.mxu0 %v422
        %433 = vmatprep.subr.mxu0 0.0
        %434 = vmatpush1.xpose.msra.mxu0 %v425
        %435 = vmatprep.subr.mxu0 0.0
        %436 = vmatpush1.xpose.msra.mxu0 0.0
        %437 = vmatprep.subr.mxu0 0.0
        %438 = vmatpush1.xpose.msra.mxu0 0.0
        %439 = vmatprep.subr.mxu0 0.0
        %440 = vmatpush1.xpose.msra.mxu0 0.0
        %441 = vmatprep.subr.mxu0 0.0
        %442 = vmatpush1.xpose.msra.mxu0 0.0
        %443 = vmatprep.subr.mxu0 0.0
        %444 = vmatpush1.xpose.msra.mxu0 0.0
        %445 = vmatprep.subr.mxu0 0.0
        %446 = vmatpush1.xpose.msra.mxu0 0.0
        %447 = vmatprep.subr.mxu0 0.0
        %448 = vmatpush1.xpose.msra.mxu0 0.0
        %449 = vmatprep.subr.mxu0 0.0
        %450 = vmatpush1.xpose.msra.mxu0 0.0
        %451 = vmatprep.subr.mxu0 0.0
        %452 = vmatpush1.xpose.msra.mxu0 0.0
        %453 = vmatprep.subr.mxu0 0.0
        %454 = vmatpush1.xpose.msra.mxu0 0.0
        %455 = vmatprep.subr.mxu0 0.0
        %456 = vmatpush1.xpose.msra.mxu0 0.0
        %457 = vmatprep.subr.mxu0 0.0
        %458 = vmatpush1.xpose.msra.mxu0 0.0
        %459 = vmatprep.subr.mxu0 0.0
        %460 = vmatpush1.xpose.msra.mxu0 0.0
        %461 = vmatprep.subr.mxu0 0.0
        %462 = vmatpush1.xpose.msra.mxu0 0.0
        %463 = vmatprep.subr.mxu0 0.0
        %464 = vmatpush1.xpose.msra.mxu0 0.0
        %465 = vmatprep.subr.mxu0 0.0
        %466 = vmatpush1.xpose.msra.mxu0 0.0
        %467 = vmatprep.subr.mxu0 0.0
        %468 = vmatpush1.xpose.msra.mxu0 0.0
        %469 = vmatprep.subr.mxu0 0.0
        %470 = vmatpush1.xpose.msra.mxu0 0.0
        %471 = vmatprep.subr.mxu0 0.0
        %472 = vmatpush1.xpose.msra.mxu0 0.0
        %473 = vmatprep.subr.mxu0 0.0
        %474 = vmatpush1.xpose.msra.mxu0 0.0
        %475 = vmatprep.subr.mxu0 0.0
        %476 = vmatpush1.xpose.msra.mxu0 0.0
        %477 = vmatprep.subr.mxu0 0.0
        %478 = vmatpush1.xpose.msra.mxu0 0.0
        %479 = vmatprep.subr.mxu0 0.0
        %480 = vmatpush1.xpose.msra.mxu0 0.0
        %481 = vmatprep.subr.mxu0 0.0
        %482 = vmatpush1.xpose.msra.mxu0 0.0
        %483 = vmatprep.subr.mxu0 0.0
        %484 = vmatpush1.xpose.msra.mxu0 0.0
        %485 = vmatprep.subr.mxu0 0.0
        %486 = vmatpush1.xpose.msra.mxu0 0.0
        %487 = vmatprep.subr.mxu0 0.0
        %488 = vmatpush1.xpose.msra.mxu0 0.0
        %489 = vmatprep.subr.mxu0 0.0
        %490 = vmatpush1.xpose.msra.mxu0 0.0
        %491 = vmatprep.mubr.f32.mxu0 0.0
        %492 = vmatmul.mubr.f32.gmra.mrb[0].mxu0 %v413
        %v493 = vpop.f32.mrb[0].mxu0
        %v494 = vadd.f32 0.0, %v493
        %v495 = vpop.f32.mrb[0].mxu0
        %496 = vdwg.mxu0
        %v497 = vadd.f32 %v406, %v494
        %498 = vst.msk [vmem:[%s267] sm:$0xff] %vm307, %v497
        // Predicated region
        $region45: #{tpu_custom_call.1} parent=39 // pred_check
          %p499 = pneg %p285
        $region46: #{tpu_custom_call.1} parent=39 // pred_check_branch
          %501 = sbr.rel (%p499) target = $region48
        $region47: #{tpu_custom_call.1} parent=39 // pred_region
          %v502 = vld [vmem:[%s267] sm:$0xff]
          %v503 = vld [vmem:[%s4] sm:$0x1]
          %v505 = vlaneseq
          %v506 = vshrl.u32 %v505, 7
          %v507 = vsub.s32 0, %v506
          %v508 = vrot.slane %v503, %v507
          %v510 = vadd.f32 %v502, %v508
          %511 = vst.msk [vmem:[%s267] sm:$0xff] %vm307, %v510
        $region48: #{tpu_custom_call.1} parent=39 // pred_fallthru
          _
        %s512 = sand.u32 %s164, 1
        %s513 = scalar_lea.sflag [#allocation3], %s512
        %s514 = sand.u32 %s164, 1
        %s515 = smul.addr %s514, 8
        %s516 = scalar_lea.vmem [#allocation2], %s515
        // Predicated region
        $region49: #{tpu_custom_call.1} parent=39 // pred_check
          %p517 = pneg %p174
        $region50: #{tpu_custom_call.1} parent=39 // pred_check_branch
          %519 = sbr.rel (%p517) target = $region52
        $region51: #{tpu_custom_call.1} parent=39 // pred_region
          %s521 = ssub.s32 128, 128
          %522 = vsyncadd %s513, %s521
          %s523 = smul.addr %s23, 128
          %s524 = scalar_lea.hbm %s5, %s523
          %s526 = sshll.u32 %s516, 4
          %s527 = int_to_ptr.vmem [resolvable:$true] %s526
          %529 = dma.vmem_to_hbm [thread:$0]  %s527, 128, %s524, %s513
        $region52: #{tpu_custom_call.1} parent=39 // pred_fallthru
          _
      $region40: #{tpu_custom_call.1} parent=5 // pred_fallthru
        _
      %p530 = scmp.le.s32.totalorder 2, %s14
      // Predicated region
      $region53: #{tpu_custom_call.1} parent=5 // pred_check
        %p531 = pneg %p530
      $region54: #{tpu_custom_call.1} parent=5 // pred_check_branch
        %533 = sbr.rel (%p531) target = $region56
      $region55: #{tpu_custom_call.1} parent=5 // pred_region
        %s534 = ssub.s32 %s14, 2
        // Predicated region
        $region57: #{tpu_custom_call.1} parent=55 // pred_check
          %p535 = pneg %p180
        $region58: #{tpu_custom_call.1} parent=55 // pred_check_branch
          %537 = sbr.rel (%p535) target = $region60
        $region59: #{tpu_custom_call.1} parent=55 // pred_region
          %s538 = sand.u32 %s165, 1
          %s539 = scalar_lea.sflag [#allocation3], %s538
          %s540 = sand.u32 %s165, 1
          %s541 = smul.addr %s540, 8
          %s542 = scalar_lea.vmem [#allocation2], %s541
          %543 = dma.done %s539, 128
        $region60: #{tpu_custom_call.1} parent=55 // pred_fallthru
          _
      $region56: #{tpu_custom_call.1} parent=5 // pred_fallthru
        _
    $region6: #{tpu_custom_call.1} parent=1 // loop_footer
      %s18 = sadd.s32 1, %s14
    $region7: #{tpu_custom_call.1} parent=1 // loop_footer_branch
      %13 = sbr.rel target = $region3
    $region8: #{tpu_custom_call.1} parent=1 // loop_exit
      _
    %544 = vsyncpa [#allocation3], 1
    %s545 = scalar_lea.sflag [#allocation3], 1
    %546 = vsyncpa %s545, 1

</llo_original>
